<compile_context>
chip_gen: v6e
topology: v6e:2x2x1
jax: 0.10.0
libtpu: 0.0.40
codegen_flags: <defaults>
</compile_context>

<pallas_src>
import jax
import jax.numpy as jnp
from jax.experimental import pallas as pl
from jax.experimental.pallas import tpu as pltpu


def embedder_kernel(ids_ref, emb_ref, w_ref, b_ref, out_ref):
    # ids_ref : (Bt, S)  int32   token ids for this batch tile (0 == padding)
    # emb_ref : (V, D)   float32 embedding table (whole table resident in VMEM)
    # w_ref   : (D, Hp)  float32 seq2seq linear weight (H zero-padded to lane multiple)
    # b_ref   : (1, Hp)  float32 seq2seq linear bias
    # out_ref : (Bt, Hp) float32 pooled sentence embedding (lane-dense)
    ids = ids_ref[...]
    Bt, S = ids.shape
    V = emb_ref.shape[0]
    Hp = w_ref.shape[1]
    N = Bt * S

    # --- mask / counts (VPU + EUP; independent of the MXU chain below) ---------
    mask = (ids != 0).astype(jnp.float32)                           # (Bt, S)
    counts = jnp.sum(mask, axis=1, keepdims=True)                   # (Bt, 1)
    inv = pl.reciprocal(jnp.maximum(counts, 1e-13), approx=True)    # EUP, not VALU divide

    # --- text_field_embedder: embedding gather, fused into the kernel ----------
    # Small-vocab gather expressed as a one-hot matmul so it runs on the MXU and the
    # (B, S, D) embedded activations never touch HBM.  The (Bt,S,V)->(N,V) reshape only
    # merges leading dims (lane dim V preserved) so it is layout-free.
    # TODO(synk): for large vocabularies replace with a scalar-prefetch / make_async_copy
    # row gather against an embedding table kept in memory_space=pl.ANY (HBM).
    onehot = (jax.lax.broadcasted_iota(jnp.int32, (Bt, S, V), 2)
              == ids[:, :, None]).astype(jnp.float32)               # (Bt, S, V)
    onehot = onehot.reshape(N, V)
    x = jnp.dot(onehot, emb_ref[...], preferred_element_type=jnp.float32)    # (N, D)

    # --- seq2seq encoder: per-token Linear + ReLU as ONE flattened MXU matmul --
    # TODO(synk): when scaling up on v6e/v7x, cast x / w to bfloat16 (keep f32 accumulate).
    h = jnp.dot(x, w_ref[...], preferred_element_type=jnp.float32)           # (N, Hp)
    h = jnp.maximum(h + b_ref[...], 0.0)

    # --- seq2vec encoder: masked mean pooling over the sequence axis -----------
    # (N, Hp) -> (Bt, S, Hp) splits the leading dim only (row-major preserved, lane dim
    # Hp untouched); the axis-1 sum is a cheap sublane reduction per batch row.
    h = h.reshape(Bt, S, Hp) * mask[:, :, None]
    summed = jnp.sum(h, axis=1)                                     # (Bt, Hp)
    out_ref[...] = summed * inv


def trainable_embedder_forward(token_ids, emb_table, w, b, *, batch_tile=8):
    """Forward pass of TrainableEmbedder.

    token_ids : (B, S) int32     (0 == padding id)
    emb_table : (V, D) float32
    w, b      : (D, H), (H,) float32
    returns   : (B, H) float32
    """
    B, S = token_ids.shape
    V, D = emb_table.shape
    H = w.shape[1]

    # Lane-dense output: pad the seq2seq output dim to a multiple of 128 so the output
    # block is a full (8,128)-aligned slab (unmasked vst); slice back to H afterwards.
    Hp = 128 * pl.cdiv(H, 128)
    w_p = jnp.pad(w.astype(jnp.float32), ((0, 0), (0, Hp - H)))
    b_p = jnp.pad(b.astype(jnp.float32), (0, Hp - H)).reshape(1, Hp)

    # Sublane-aligned batch tile; pad B with all-padding rows (masked to zero) and slice.
    # VMEM budget per grid step (double-buffered): 2*Bt*S*4 (ids) + 2*Bt*Hp*4 (out) plus
    # the resident V*D*4 + D*Hp*4 table/weights -- kilobytes here, far under v7x's 64 MiB,
    # so the tile is limited by B, not VMEM; grow batch_tile (it only needs to stay a
    # multiple of 8) if B gets large so the flattened matmul M-dim amortises the ~0.35us
    # per-grid-step overhead.
    Bt = batch_tile
    B_pad = Bt * pl.cdiv(B, Bt)
    ids_p = jnp.pad(token_ids.astype(jnp.int32), ((0, B_pad - B), (0, 0)))

    n_tiles = B_pad // Bt
    N = Bt * S
    flops_per_tile = 2 * N * V * D + 2 * N * D * Hp + 4 * N * Hp
    bytes_per_tile = (Bt * S * 4) + (Bt * Hp * 4)
    cost = pl.CostEstimate(
        flops=n_tiles * flops_per_tile,
        transcendentals=n_tiles * Bt,                 # approx reciprocal per batch row
        bytes_accessed=n_tiles * bytes_per_tile + (V * D + D * Hp + Hp) * 4,
    )

    out = pl.pallas_call(
        embedder_kernel,
        out_shape=jax.ShapeDtypeStruct((B_pad, Hp), jnp.float32),
        grid_spec=pltpu.PrefetchScalarGridSpec(
            num_scalar_prefetch=0,
            grid=(n_tiles,),
            in_specs=[
                pl.BlockSpec((Bt, S), lambda i: (i, 0)),    # token ids (per batch tile)
                pl.BlockSpec((V, D), lambda i: (0, 0)),     # embedding table (resident)
                pl.BlockSpec((D, Hp), lambda i: (0, 0)),    # seq2seq weight (resident)
                pl.BlockSpec((1, Hp), lambda i: (0, 0)),    # seq2seq bias (resident)
            ],
            out_specs=pl.BlockSpec((Bt, Hp), lambda i: (i, 0)),
        ),
        compiler_params=pltpu.CompilerParams(
            dimension_semantics=("parallel",),       # batch tiles shard across TensorCores
            vmem_limit_bytes=32 * 1024 * 1024,       # explicit; fits v5e/v6e and v7x (64 MiB)
        ),
        cost_estimate=cost,
    )(ids_p, emb_table.astype(jnp.float32), w_p, b_p)

    return out[:B, :H]


def _reference(token_ids, emb_table, w, b):
    """Plain-JAX reference matching the PyTorch semantics."""
    embedded = emb_table[token_ids].astype(jnp.float32)
    mask = (token_ids != 0).astype(jnp.float32)
    h = jnp.einsum("bsd,dh->bsh", embedded, w) + b[None, None, :]
    h = jnp.maximum(h, 0.0)
    summed = jnp.sum(h * mask[:, :, None], axis=1)
    counts = jnp.sum(mask, axis=1, keepdims=True)
    return summed / jnp.maximum(counts, 1e-13)


if __name__ == "__main__":
    B, S = 2, 8           # batch, sequence length
    V, D, H = 50, 32, 32  # vocab, embedding dim, seq2seq output dim

    key = jax.random.PRNGKey(0)
    k_tok, k_emb, k_w, k_b = jax.random.split(key, 4)

    # Token ids with explicit padding (0) at the tail of each sequence.
    token_ids = jax.random.randint(k_tok, (B, S), 1, V, dtype=jnp.int32)
    token_ids = token_ids.at[0, 6:].set(0)
    token_ids = token_ids.at[1, 4:].set(0)

    # Deterministic parameter init (synthetic; no checkpoint loading).
    emb_table = jax.random.normal(k_emb, (V, D), dtype=jnp.float32) * 0.1
    w = jax.random.normal(k_w, (D, H), dtype=jnp.float32) * (1.0 / jnp.sqrt(D))
    b = jax.random.normal(k_b, (H,), dtype=jnp.float32) * 0.01

    out = trainable_embedder_forward(token_ids, emb_table, w, b)
    out = jax.block_until_ready(out)

    ref = _reference(token_ids, emb_table, w, b)
    assert out.shape == (B, H)
    # Tolerance slightly relaxed vs. exact f32: the pooled mean uses the EUP approximate
    # reciprocal (pl.reciprocal(approx=True)); everything else is exact f32 math.
    assert jnp.allclose(out, ref, atol=5e-4, rtol=1e-3), "mismatch vs reference"

    print("KERNEL_OK")
</pallas_src>

<mosaic_0001>
module attributes {stable_mosaic.version = 11 : i64} {
  func.func @embedder_kernel(%arg0: i32, %arg1: memref<8x8xi32, #tpu.memory_space<vmem>>, %arg2: memref<50x32xf32, #tpu.memory_space<vmem>>, %arg3: memref<32x128xf32, #tpu.memory_space<vmem>>, %arg4: memref<1x128xf32, #tpu.memory_space<vmem>>, %arg5: memref<8x128xf32, #tpu.memory_space<vmem>>) attributes {dimension_semantics = [#tpu.dimension_semantics<parallel>], iteration_bounds = array<i64: 1>, scalar_prefetch = 0 : i64, scratch_operands = 0 : i64, tpu.core_type = #tpu.core_type<tc>, window_params = [{transform_indices = @transform_0, window_bounds = array<i64: 8, 8>}, {pipeline_mode = #tpu.pipeline_mode<synchronous>, transform_indices = @transform_1, window_bounds = array<i64: 50, 32>}, {pipeline_mode = #tpu.pipeline_mode<synchronous>, transform_indices = @transform_2, window_bounds = array<i64: 32, 128>}, {pipeline_mode = #tpu.pipeline_mode<synchronous>, transform_indices = @transform_3, window_bounds = array<i64: 1, 128>}, {transform_indices = @transform_4, window_bounds = array<i64: 8, 128>}]} {
    %c0 = arith.constant 0 : index
    %c0_0 = arith.constant 0 : index
    %0 = vector.load %arg1[%c0, %c0_0] : memref<8x8xi32, #tpu.memory_space<vmem>>, vector<8x8xi32>
    %c0_i32 = arith.constant 0 : i32
    %1 = vector.broadcast %c0_i32 : i32 to vector<8x8xi32>
    %2 = arith.cmpi ne, %0, %1 : vector<8x8xi32>
    %3 = arith.extui %2 : vector<8x8xi1> to vector<8x8xi32>
    %4 = arith.sitofp %3 : vector<8x8xi32> to vector<8x8xf32>
    %cst = arith.constant dense<0.000000e+00> : vector<8xf32>
    %5 = vector.multi_reduction <add>, %4, %cst [1] : vector<8x8xf32> to vector<8xf32>
    %6 = vector.shape_cast %5 : vector<8xf32> to vector<8x1xf32>
    %cst_1 = arith.constant 9.99999982E-14 : f32
    %7 = vector.broadcast %cst_1 : f32 to vector<8x1xf32>
    %8 = arith.maximumf %6, %7 : vector<8x1xf32>
    %9 = tpu.reciprocal %8 {approx = true} : vector<8x1xf32> -> vector<8x1xf32>
    %10 = tpu.iota {dimensions = array<i32: 2>} : vector<8x8x50xi32>
    %11 = vector.shape_cast %0 : vector<8x8xi32> to vector<8x8x1xi32>
    %12 = vector.broadcast %11 : vector<8x8x1xi32> to vector<8x8x50xi32>
    %13 = arith.cmpi eq, %10, %12 : vector<8x8x50xi32>
    %14 = arith.extui %13 : vector<8x8x50xi1> to vector<8x8x50xi32>
    %15 = arith.sitofp %14 : vector<8x8x50xi32> to vector<8x8x50xf32>
    %16 = vector.shape_cast %15 : vector<8x8x50xf32> to vector<64x50xf32>
    %c0_2 = arith.constant 0 : index
    %c0_3 = arith.constant 0 : index
    %17 = vector.load %arg2[%c0_2, %c0_3] : memref<50x32xf32, #tpu.memory_space<vmem>>, vector<50x32xf32>
    %cst_4 = arith.constant dense<0.000000e+00> : vector<64x32xf32>
    %18 = tpu.matmul %16, %17, %cst_4 {dimension_numbers = #tpu.dot_dimension_numbers<[1], [0], [0], [1], [0, 0, 1, 1], [], []>} : vector<64x50xf32>, vector<50x32xf32>, vector<64x32xf32> -> vector<64x32xf32>
    %c0_5 = arith.constant 0 : index
    %c0_6 = arith.constant 0 : index
    %19 = vector.load %arg3[%c0_5, %c0_6] : memref<32x128xf32, #tpu.memory_space<vmem>>, vector<32x128xf32>
    %cst_7 = arith.constant dense<0.000000e+00> : vector<64x128xf32>
    %20 = tpu.matmul %18, %19, %cst_7 {dimension_numbers = #tpu.dot_dimension_numbers<[1], [0], [0], [1], [0, 0, 1, 1], [], []>} : vector<64x32xf32>, vector<32x128xf32>, vector<64x128xf32> -> vector<64x128xf32>
    %c0_8 = arith.constant 0 : index
    %c0_9 = arith.constant 0 : index
    %21 = vector.load %arg4[%c0_8, %c0_9] : memref<1x128xf32, #tpu.memory_space<vmem>>, vector<1x128xf32>
    %22 = vector.broadcast %21 : vector<1x128xf32> to vector<64x128xf32>
    %23 = arith.addf %20, %22 : vector<64x128xf32>
    %cst_10 = arith.constant 0.000000e+00 : f32
    %24 = vector.broadcast %cst_10 : f32 to vector<64x128xf32>
    %25 = arith.maximumf %23, %24 : vector<64x128xf32>
    %26 = vector.shape_cast %25 : vector<64x128xf32> to vector<8x8x128xf32>
    %27 = vector.shape_cast %4 : vector<8x8xf32> to vector<8x8x1xf32>
    %28 = vector.broadcast %27 : vector<8x8x1xf32> to vector<8x8x128xf32>
    %29 = arith.mulf %26, %28 : vector<8x8x128xf32>
    %cst_11 = arith.constant dense<0.000000e+00> : vector<8x128xf32>
    %30 = vector.multi_reduction <add>, %29, %cst_11 [1] : vector<8x8x128xf32> to vector<8x128xf32>
    %31 = vector.broadcast %9 : vector<8x1xf32> to vector<8x128xf32>
    %32 = arith.mulf %30, %31 : vector<8x128xf32>
    %c0_12 = arith.constant 0 : index
    %c0_13 = arith.constant 0 : index
    %33 = vector.load %arg5[%c0_12, %c0_13] : memref<8x128xf32, #tpu.memory_space<vmem>>, vector<8x128xf32>
    tpu.vector_store %arg5[%c0_12, %c0_13], %32 {strides = array<i32>} : memref<8x128xf32, #tpu.memory_space<vmem>>, vector<8x128xf32>,
    return
  }
  func.func @transform_0(%arg0: i32) -> (i32, i32) {
    %c0_i32 = arith.constant 0 : i32
    %c0_i32_0 = arith.constant 0 : i32
    return %arg0, %c0_i32 : i32, i32
  }
  func.func @transform_1(%arg0: i32) -> (i32, i32) {
    %c0_i32 = arith.constant 0 : i32
    %c0_i32_0 = arith.constant 0 : i32
    %c0_i32_1 = arith.constant 0 : i32
    return %c0_i32, %c0_i32_0 : i32, i32
  }
  func.func @transform_2(%arg0: i32) -> (i32, i32) {
    %c0_i32 = arith.constant 0 : i32
    %c0_i32_0 = arith.constant 0 : i32
    %c0_i32_1 = arith.constant 0 : i32
    return %c0_i32, %c0_i32_0 : i32, i32
  }
  func.func @transform_3(%arg0: i32) -> (i32, i32) {
    %c0_i32 = arith.constant 0 : i32
    %c0_i32_0 = arith.constant 0 : i32
    %c0_i32_1 = arith.constant 0 : i32
    return %c0_i32, %c0_i32_0 : i32, i32
  }
  func.func @transform_4(%arg0: i32) -> (i32, i32) {
    %c0_i32 = arith.constant 0 : i32
    %c0_i32_0 = arith.constant 0 : i32
    return %arg0, %c0_i32 : i32, i32
  }
}

</mosaic_0001>

<llo_original>
// kernel: tpu_custom_call.1
$region0: #{tpu_custom_call.1}
  #allocation0 [shape = 'u32[]', space=smem, size = 0x4, offset = 0x4, fixed_abs, tag = 'smem constant byte address 0x4 - core index']
  #allocation1 [shape = 'u32[144,128]{1,0:T(1,128)}', space=vmem, size = 0x12000, scoped, tag = 'internal scratch']
  %s0 = inlined_call_operand.vmem [shape: s32[8,8], index: 0, kind: input, shape index: {}]
  %s1 = inlined_call_operand.vmem [shape: f32[50,32], index: 1, kind: input, shape index: {}]
  %s2 = inlined_call_operand.vmem [shape: f32[32,128], index: 2, kind: input, shape index: {}]
  %s3 = inlined_call_operand.vmem [shape: f32[1,128], index: 3, kind: input, shape index: {}]
  %s4 = inlined_call_operand.hbm [shape: f32[8,128], index: 4, kind: output, shape index: {}]
  %s5 = sld [smem:[#allocation0]]
  $region26: #{tpu_custom_call.1} parent=0
    _
  %s7 = ssub.s32 1, %s5
  %s8 = scalar_select 0, %s7, %s5
  $region1: #{tpu_custom_call.1} parent=0
    #allocation2 [shape = 'u8[4096]{0}', space=vmem, size = 0x1000, scoped, tag = 'output window, operand 0, single buffered']
    #allocation3 [shape = 's32[1]{0}', space=sflag, size = 0x4, scoped, tag = 'scoped memory for tpu_custom_call.1']
    %9 = vsyncpa [#allocation3], 0
    // Predicated region
    $region2: #{tpu_custom_call.1} parent=1 // pred_check
      _
    $region3: #{tpu_custom_call.1} parent=1 // pred_check_branch
      %11 = sbr.rel (0) target = $region5
    $region4: #{tpu_custom_call.1} parent=1 // pred_region
      _
    $region5: #{tpu_custom_call.1} parent=1 // pred_fallthru
      _
    // Predicated region
    $region6: #{tpu_custom_call.1} parent=1 // pred_check
      _
    $region7: #{tpu_custom_call.1} parent=1 // pred_check_branch
      %13 = sbr.rel (0) target = $region9
    $region8: #{tpu_custom_call.1} parent=1 // pred_region
      _
    $region9: #{tpu_custom_call.1} parent=1 // pred_fallthru
      _
    // Predicated region
    $region10: #{tpu_custom_call.1} parent=1 // pred_check
      _
    $region11: #{tpu_custom_call.1} parent=1 // pred_check_branch
      %15 = sbr.rel (0) target = $region13
    $region12: #{tpu_custom_call.1} parent=1 // pred_region
      _
    $region13: #{tpu_custom_call.1} parent=1 // pred_fallthru
      _
    // Predicated region
    $region14: #{tpu_custom_call.1} parent=1 // pred_check
      _
    $region15: #{tpu_custom_call.1} parent=1 // pred_check_branch
      %17 = sbr.rel (0) target = $region17
    $region16: #{tpu_custom_call.1} parent=1 // pred_region
      _
    $region17: #{tpu_custom_call.1} parent=1 // pred_fallthru
      _
    %v18 = vld [vmem:[%s0] sm:$0xff]
    %vm19 = vcmp.ne.s32.totalorder %v18, 0
    %v20 = vsel %vm19, 1, 0
    %v21 = vcvt.s32.f32 %v20
    %vm22 = vcmask 64512
    %v23 = vsel %vm22, %v21, 0.0
    %24 = vadd.xlane.f32.xlu0 %v23
    %v25 = vpop.xlane.xlu0 %24
    %v26 = vmax.f32 %v25, 1e-13
    %v27 = vrcp.pop %v26
    %v28 = vlaneseq
    %v29 = vand.u32 %v28, 127
    %v30 = vlaneseq
    %v31 = vshrl.u32 %v30, 7
    %v32 = vsub.s32 0, %v31
    %v33 = vrot.slane %v18, %v32
    %35 = vbcast.lane.b32.xlu0 %v33, 256
    %v36 = vpop.permute.xlu0 %35
    %v37 = vlaneseq
    %v38 = vshrl.u32 %v37, 7
    %v39 = vsub.s32 1, %v38
    %v40 = vrot.slane %v18, %v39
    %42 = vbcast.lane.b32.xlu0 %v40, 256
    %v43 = vpop.permute.xlu0 %42
    %v44 = vlaneseq
    %v45 = vshrl.u32 %v44, 7
    %v46 = vsub.s32 2, %v45
    %v47 = vrot.slane %v18, %v46
    %49 = vbcast.lane.b32.xlu0 %v47, 256
    %v50 = vpop.permute.xlu0 %49
    %v51 = vlaneseq
    %v52 = vshrl.u32 %v51, 7
    %v53 = vsub.s32 3, %v52
    %v54 = vrot.slane %v18, %v53
    %56 = vbcast.lane.b32.xlu0 %v54, 256
    %v57 = vpop.permute.xlu0 %56
    %v58 = vlaneseq
    %v59 = vshrl.u32 %v58, 7
    %v60 = vsub.s32 4, %v59
    %v61 = vrot.slane %v18, %v60
    %63 = vbcast.lane.b32.xlu0 %v61, 256
    %v64 = vpop.permute.xlu0 %63
    %v65 = vlaneseq
    %v66 = vshrl.u32 %v65, 7
    %v67 = vsub.s32 5, %v66
    %v68 = vrot.slane %v18, %v67
    %70 = vbcast.lane.b32.xlu0 %v68, 256
    %v71 = vpop.permute.xlu0 %70
    %v72 = vlaneseq
    %v73 = vshrl.u32 %v72, 7
    %v74 = vsub.s32 6, %v73
    %v75 = vrot.slane %v18, %v74
    %77 = vbcast.lane.b32.xlu0 %v75, 256
    %v78 = vpop.permute.xlu0 %77
    %v79 = vlaneseq
    %v80 = vshrl.u32 %v79, 7
    %v81 = vsub.s32 7, %v80
    %v82 = vrot.slane %v18, %v81
    %84 = vbcast.lane.b32.xlu0 %v82, 256
    %v85 = vpop.permute.xlu0 %84
    %vm86 = vcmp.eq.s32.totalorder %v29, %v36
    %vm87 = vcmp.eq.s32.totalorder %v29, %v43
    %vm88 = vcmp.eq.s32.totalorder %v29, %v50
    %vm89 = vcmp.eq.s32.totalorder %v29, %v57
    %vm90 = vcmp.eq.s32.totalorder %v29, %v64
    %vm91 = vcmp.eq.s32.totalorder %v29, %v71
    %vm92 = vcmp.eq.s32.totalorder %v29, %v78
    %vm93 = vcmp.eq.s32.totalorder %v29, %v85
    %v94 = vsel %vm86, 1, 0
    %v95 = vsel %vm87, 1, 0
    %v96 = vsel %vm88, 1, 0
    %v97 = vsel %vm89, 1, 0
    %v98 = vsel %vm90, 1, 0
    %v99 = vsel %vm91, 1, 0
    %v100 = vsel %vm92, 1, 0
    %v101 = vsel %vm93, 1, 0
    %v102 = vcvt.s32.f32 %v94
    %v103 = vcvt.s32.f32 %v95
    %v104 = vcvt.s32.f32 %v96
    %v105 = vcvt.s32.f32 %v97
    %v106 = vcvt.s32.f32 %v98
    %v107 = vcvt.s32.f32 %v99
    %v108 = vcvt.s32.f32 %v100
    %v109 = vcvt.s32.f32 %v101
    %v110 = vld [vmem:[%s1] sm:$0xff]
    %v111 = vld [vmem:[%s1 + $0x8] sm:$0xff]
    %v112 = vld [vmem:[%s1 + $0x10] sm:$0xff]
    %v113 = vld [vmem:[%s1 + $0x18] sm:$0xff]
    %v114 = vld [vmem:[%s1 + $0x20] sm:$0xff]
    %v115 = vld [vmem:[%s1 + $0x28] sm:$0xff]
    %v116 = vld [vmem:[%s1 + $0x30] sm:$0x3]
    %vm117 = vcmask 408576
    %v119 = vsel %vm117, %v102, 0
    %v122 = vsel %vm117, %v103, 0
    %v125 = vsel %vm117, %v104, 0
    %v128 = vsel %vm117, %v105, 0
    %v131 = vsel %vm117, %v106, 0
    %v134 = vsel %vm117, %v107, 0
    %v137 = vsel %vm117, %v108, 0
    %v140 = vsel %vm117, %v109, 0
    %vm142 = vcmask 1041408
    %v144 = vsel %vm142, %v116, 0
    %146 = vmatprep.subr.mxu0 0.0
    %147 = vmatpush1.msra.mxu0 0.0
    %148 = vmatprep.subr.mxu0 0.0
    %149 = vmatpush1.msra.mxu0 0.0
    %150 = vmatprep.subr.mxu0 0.0
    %151 = vmatpush1.msra.mxu0 0.0
    %152 = vmatprep.subr.mxu0 0.0
    %153 = vmatpush1.msra.mxu0 0.0
    %154 = vmatprep.subr.mxu0 0.0
    %155 = vmatpush1.msra.mxu0 0.0
    %156 = vmatprep.subr.mxu0 0.0
    %157 = vmatpush1.msra.mxu0 0.0
    %158 = vmatprep.subr.mxu0 0.0
    %159 = vmatpush1.msra.mxu0 0.0
    %160 = vmatprep.subr.mxu0 0.0
    %161 = vmatpush1.msra.mxu0 0.0
    %162 = vmatprep.subr.mxu0 0.0
    %163 = vmatpush1.msra.mxu0 0.0
    %164 = vmatprep.subr.mxu0 0.0
    %165 = vmatpush1.msra.mxu0 %v144
    %166 = vmatprep.subr.mxu0 0.0
    %167 = vmatpush1.msra.mxu0 %v115
    %168 = vmatprep.subr.mxu0 0.0
    %169 = vmatpush1.msra.mxu0 %v114
    %170 = vmatprep.subr.mxu0 0.0
    %171 = vmatpush1.msra.mxu0 %v113
    %172 = vmatprep.subr.mxu0 0.0
    %173 = vmatpush1.msra.mxu0 %v112
    %174 = vmatprep.subr.mxu0 0.0
    %175 = vmatpush1.msra.mxu0 %v111
    %176 = vmatprep.subr.mxu0 0.0
    %177 = vmatpush1.msra.mxu0 %v110
    %178 = vmatprep.subr.mxu0 0.0
    %179 = vmatpush2.msra.mxu0 0.0
    %180 = vmatprep.subr.mxu0 0.0
    %181 = vmatpush2.msra.mxu0 0.0
    %182 = vmatprep.subr.mxu0 0.0
    %183 = vmatpush2.msra.mxu0 0.0
    %184 = vmatprep.subr.mxu0 0.0
    %185 = vmatpush2.msra.mxu0 0.0
    %186 = vmatprep.subr.mxu0 0.0
    %187 = vmatpush2.msra.mxu0 0.0
    %188 = vmatprep.subr.mxu0 0.0
    %189 = vmatpush2.msra.mxu0 0.0
    %190 = vmatprep.subr.mxu0 0.0
    %191 = vmatpush2.msra.mxu0 0.0
    %192 = vmatprep.subr.mxu0 0.0
    %193 = vmatpush2.msra.mxu0 0.0
    %194 = vmatprep.subr.mxu0 0.0
    %195 = vmatpush2.msra.mxu0 0.0
    %196 = vmatprep.subr.mxu0 0.0
    %197 = vmatpush2.msra.mxu0 0.0
    %198 = vmatprep.subr.mxu0 0.0
    %199 = vmatpush2.msra.mxu0 0.0
    %200 = vmatprep.subr.mxu0 0.0
    %201 = vmatpush2.msra.mxu0 0.0
    %202 = vmatprep.subr.mxu0 0.0
    %203 = vmatpush2.msra.mxu0 0.0
    %204 = vmatprep.subr.mxu0 0.0
    %205 = vmatpush2.msra.mxu0 0.0
    %206 = vmatprep.subr.mxu0 0.0
    %207 = vmatpush2.msra.mxu0 0.0
    %208 = vmatprep.subr.mxu0 0.0
    %209 = vmatpush2.msra.mxu0 0.0
    %210 = vmatprep.mubr.f32.mxu0 0.0
    %211 = vmatmul.mubr.f32.gmra.mxu0 %v119
    %v212 = vpop.f32.mrf.mxu0
    %v213 = vadd.f32 0.0, %v212
    %v214 = vpop.f32.mrf.mxu0
    %215 = vmatprep.mubr.f32.mxu0 0.0
    %216 = vmatmul.mubr.f32.gmra.mxu0 %v122
    %v217 = vpop.f32.mrf.mxu0
    %v218 = vadd.f32 0.0, %v217
    %v219 = vpop.f32.mrf.mxu0
    %220 = vmatprep.mubr.f32.mxu0 0.0
    %221 = vmatmul.mubr.f32.gmra.mxu0 %v125
    %v222 = vpop.f32.mrf.mxu0
    %v223 = vadd.f32 0.0, %v222
    %v224 = vpop.f32.mrf.mxu0
    %225 = vmatprep.mubr.f32.mxu0 0.0
    %226 = vmatmul.mubr.f32.gmra.mxu0 %v128
    %v227 = vpop.f32.mrf.mxu0
    %v228 = vadd.f32 0.0, %v227
    %v229 = vpop.f32.mrf.mxu0
    %230 = vmatprep.mubr.f32.mxu0 0.0
    %231 = vmatmul.mubr.f32.gmra.mxu0 %v131
    %v232 = vpop.f32.mrf.mxu0
    %v233 = vadd.f32 0.0, %v232
    %v234 = vpop.f32.mrf.mxu0
    %235 = vmatprep.mubr.f32.mxu0 0.0
    %236 = vmatmul.mubr.f32.gmra.mxu0 %v134
    %v237 = vpop.f32.mrf.mxu0
    %v238 = vadd.f32 0.0, %v237
    %v239 = vpop.f32.mrf.mxu0
    %240 = vmatprep.mubr.f32.mxu0 0.0
    %241 = vmatmul.mubr.f32.gmra.mxu0 %v137
    %v242 = vpop.f32.mrf.mxu0
    %v243 = vadd.f32 0.0, %v242
    %v244 = vpop.f32.mrf.mxu0
    %245 = vmatprep.mubr.f32.mxu0 0.0
    %246 = vmatmul.mubr.f32.gmra.mxu0 %v140
    %v247 = vpop.f32.mrf.mxu0
    %v248 = vadd.f32 0.0, %v247
    %v249 = vpop.f32.mrf.mxu0
    %250 = vdwg.mxu0
    %v251 = vld [vmem:[%s2] sm:$0xff]
    %v252 = vld [vmem:[%s2 + $0x8] sm:$0xff]
    %v253 = vld [vmem:[%s2 + $0x10] sm:$0xff]
    %v254 = vld [vmem:[%s2 + $0x18] sm:$0xff]
    %v255 = vld [vmem:[%s3] sm:$0x1]
    %v257 = vlaneseq
    %v258 = vshrl.u32 %v257, 7
    %v259 = vsub.s32 0, %v258
    %v260 = vrot.slane %v255, %v259
    %vm262 = vcmask 261120
    %v264 = vsel %vm262, %v213, 0
    %v267 = vsel %vm262, %v218, 0
    %v270 = vsel %vm262, %v223, 0
    %v273 = vsel %vm262, %v228, 0
    %v276 = vsel %vm262, %v233, 0
    %v279 = vsel %vm262, %v238, 0
    %v282 = vsel %vm262, %v243, 0
    %v285 = vsel %vm262, %v248, 0
    %287 = vmatprep.subr.mxu0 0.0
    %288 = vmatpush1.msra.mxu0 0.0
    %289 = vmatprep.subr.mxu0 0.0
    %290 = vmatpush1.msra.mxu0 0.0
    %291 = vmatprep.subr.mxu0 0.0
    %292 = vmatpush1.msra.mxu0 0.0
    %293 = vmatprep.subr.mxu0 0.0
    %294 = vmatpush1.msra.mxu0 0.0
    %295 = vmatprep.subr.mxu0 0.0
    %296 = vmatpush1.msra.mxu0 0.0
    %297 = vmatprep.subr.mxu0 0.0
    %298 = vmatpush1.msra.mxu0 0.0
    %299 = vmatprep.subr.mxu0 0.0
    %300 = vmatpush1.msra.mxu0 0.0
    %301 = vmatprep.subr.mxu0 0.0
    %302 = vmatpush1.msra.mxu0 0.0
    %303 = vmatprep.subr.mxu0 0.0
    %304 = vmatpush1.msra.mxu0 0.0
    %305 = vmatprep.subr.mxu0 0.0
    %306 = vmatpush1.msra.mxu0 0.0
    %307 = vmatprep.subr.mxu0 0.0
    %308 = vmatpush1.msra.mxu0 0.0
    %309 = vmatprep.subr.mxu0 0.0
    %310 = vmatpush1.msra.mxu0 0.0
    %311 = vmatprep.subr.mxu0 0.0
    %312 = vmatpush1.msra.mxu0 %v254
    %313 = vmatprep.subr.mxu0 0.0
    %314 = vmatpush1.msra.mxu0 %v253
    %315 = vmatprep.subr.mxu0 0.0
    %316 = vmatpush1.msra.mxu0 %v252
    %317 = vmatprep.subr.mxu0 0.0
    %318 = vmatpush1.msra.mxu0 %v251
    %319 = vmatprep.subr.mxu0 0.0
    %320 = vmatpush2.msra.mxu0 0.0
    %321 = vmatprep.subr.mxu0 0.0
    %322 = vmatpush2.msra.mxu0 0.0
    %323 = vmatprep.subr.mxu0 0.0
    %324 = vmatpush2.msra.mxu0 0.0
    %325 = vmatprep.subr.mxu0 0.0
    %326 = vmatpush2.msra.mxu0 0.0
    %327 = vmatprep.subr.mxu0 0.0
    %328 = vmatpush2.msra.mxu0 0.0
    %329 = vmatprep.subr.mxu0 0.0
    %330 = vmatpush2.msra.mxu0 0.0
    %331 = vmatprep.subr.mxu0 0.0
    %332 = vmatpush2.msra.mxu0 0.0
    %333 = vmatprep.subr.mxu0 0.0
    %334 = vmatpush2.msra.mxu0 0.0
    %335 = vmatprep.subr.mxu0 0.0
    %336 = vmatpush2.msra.mxu0 0.0
    %337 = vmatprep.subr.mxu0 0.0
    %338 = vmatpush2.msra.mxu0 0.0
    %339 = vmatprep.subr.mxu0 0.0
    %340 = vmatpush2.msra.mxu0 0.0
    %341 = vmatprep.subr.mxu0 0.0
    %342 = vmatpush2.msra.mxu0 0.0
    %343 = vmatprep.subr.mxu0 0.0
    %344 = vmatpush2.msra.mxu0 0.0
    %345 = vmatprep.subr.mxu0 0.0
    %346 = vmatpush2.msra.mxu0 0.0
    %347 = vmatprep.subr.mxu0 0.0
    %348 = vmatpush2.msra.mxu0 0.0
    %349 = vmatprep.subr.mxu0 0.0
    %350 = vmatpush2.msra.mxu0 0.0
    %351 = vmatprep.mubr.f32.mxu0 0.0
    %352 = vmatmul.mubr.f32.gmra.mxu0 %v264
    %v353 = vpop.f32.mrf.mxu0
    %v354 = vadd.f32 %v260, %v353
    %v355 = vpop.f32.mrf.mxu0
    %356 = vmatprep.mubr.f32.mxu0 0.0
    %357 = vmatmul.mubr.f32.gmra.mxu0 %v267
    %v358 = vpop.f32.mrf.mxu0
    %v359 = vadd.f32 %v260, %v358
    %v360 = vpop.f32.mrf.mxu0
    %361 = vmatprep.mubr.f32.mxu0 0.0
    %362 = vmatmul.mubr.f32.gmra.mxu0 %v270
    %v363 = vpop.f32.mrf.mxu0
    %v364 = vadd.f32 %v260, %v363
    %v365 = vpop.f32.mrf.mxu0
    %366 = vmatprep.mubr.f32.mxu0 0.0
    %367 = vmatmul.mubr.f32.gmra.mxu0 %v273
    %v368 = vpop.f32.mrf.mxu0
    %v369 = vadd.f32 %v260, %v368
    %v370 = vpop.f32.mrf.mxu0
    %371 = vmatprep.mubr.f32.mxu0 0.0
    %372 = vmatmul.mubr.f32.gmra.mxu0 %v276
    %v373 = vpop.f32.mrf.mxu0
    %v374 = vadd.f32 %v260, %v373
    %v375 = vpop.f32.mrf.mxu0
    %376 = vmatprep.mubr.f32.mxu0 0.0
    %377 = vmatmul.mubr.f32.gmra.mxu0 %v279
    %v378 = vpop.f32.mrf.mxu0
    %v379 = vadd.f32 %v260, %v378
    %v380 = vpop.f32.mrf.mxu0
    %381 = vmatprep.mubr.f32.mxu0 0.0
    %382 = vmatmul.mubr.f32.gmra.mxu0 %v282
    %v383 = vpop.f32.mrf.mxu0
    %v384 = vadd.f32 %v260, %v383
    %v385 = vpop.f32.mrf.mxu0
    %386 = vmatprep.mubr.f32.mxu0 0.0
    %387 = vmatmul.mubr.f32.gmra.mxu0 %v285
    %v388 = vpop.f32.mrf.mxu0
    %v389 = vadd.f32 %v260, %v388
    %v390 = vpop.f32.mrf.mxu0
    %391 = vdwg.mxu0
    %v392 = vmax.f32 %v354, 0.0
    %v393 = vmax.f32 %v359, 0.0
    %v394 = vmax.f32 %v364, 0.0
    %v395 = vmax.f32 %v369, 0.0
    %v396 = vmax.f32 %v374, 0.0
    %v397 = vmax.f32 %v379, 0.0
    %v398 = vmax.f32 %v384, 0.0
    %v399 = vmax.f32 %v389, 0.0
    %v400 = vlaneseq
    %v401 = vshrl.u32 %v400, 7
    %v402 = vsub.s32 0, %v401
    %v403 = vrot.slane %v21, %v402
    %405 = vbcast.lane.b32.xlu0 %v403, 256
    %v406 = vpop.permute.xlu0 %405
    %v407 = vlaneseq
    %v408 = vshrl.u32 %v407, 7
    %v409 = vsub.s32 1, %v408
    %v410 = vrot.slane %v21, %v409
    %412 = vbcast.lane.b32.xlu0 %v410, 256
    %v413 = vpop.permute.xlu0 %412
    %v414 = vlaneseq
    %v415 = vshrl.u32 %v414, 7
    %v416 = vsub.s32 2, %v415
    %v417 = vrot.slane %v21, %v416
    %419 = vbcast.lane.b32.xlu0 %v417, 256
    %v420 = vpop.permute.xlu0 %419
    %v421 = vlaneseq
    %v422 = vshrl.u32 %v421, 7
    %v423 = vsub.s32 3, %v422
    %v424 = vrot.slane %v21, %v423
    %426 = vbcast.lane.b32.xlu0 %v424, 256
    %v427 = vpop.permute.xlu0 %426
    %v428 = vlaneseq
    %v429 = vshrl.u32 %v428, 7
    %v430 = vsub.s32 4, %v429
    %v431 = vrot.slane %v21, %v430
    %433 = vbcast.lane.b32.xlu0 %v431, 256
    %v434 = vpop.permute.xlu0 %433
    %v435 = vlaneseq
    %v436 = vshrl.u32 %v435, 7
    %v437 = vsub.s32 5, %v436
    %v438 = vrot.slane %v21, %v437
    %440 = vbcast.lane.b32.xlu0 %v438, 256
    %v441 = vpop.permute.xlu0 %440
    %v442 = vlaneseq
    %v443 = vshrl.u32 %v442, 7
    %v444 = vsub.s32 6, %v443
    %v445 = vrot.slane %v21, %v444
    %447 = vbcast.lane.b32.xlu0 %v445, 256
    %v448 = vpop.permute.xlu0 %447
    %v449 = vlaneseq
    %v450 = vshrl.u32 %v449, 7
    %v451 = vsub.s32 7, %v450
    %v452 = vrot.slane %v21, %v451
    %454 = vbcast.lane.b32.xlu0 %v452, 256
    %v455 = vpop.permute.xlu0 %454
    %v456 = vmul.f32 %v392, %v406
    %v457 = vmul.f32 %v393, %v413
    %v458 = vmul.f32 %v394, %v420
    %v459 = vmul.f32 %v395, %v427
    %v460 = vmul.f32 %v396, %v434
    %v461 = vmul.f32 %v397, %v441
    %v462 = vmul.f32 %v398, %v448
    %v463 = vmul.f32 %v399, %v455
    %v464 = vrot.slane %v456, 4
    %v465 = vadd.f32 %v456, %v464
    %v466 = vrot.slane %v465, 2
    %v467 = vadd.f32 %v465, %v466
    %v468 = vrot.slane %v467, 1
    %v469 = vadd.f32 %v467, %v468
    %v470 = vrot.slane %v457, 4
    %v471 = vadd.f32 %v457, %v470
    %v472 = vrot.slane %v471, 2
    %v473 = vadd.f32 %v471, %v472
    %v474 = vrot.slane %v473, 1
    %v475 = vadd.f32 %v473, %v474
    %v476 = vrot.slane %v458, 4
    %v477 = vadd.f32 %v458, %v476
    %v478 = vrot.slane %v477, 2
    %v479 = vadd.f32 %v477, %v478
    %v480 = vrot.slane %v479, 1
    %v481 = vadd.f32 %v479, %v480
    %v482 = vrot.slane %v459, 4
    %v483 = vadd.f32 %v459, %v482
    %v484 = vrot.slane %v483, 2
    %v485 = vadd.f32 %v483, %v484
    %v486 = vrot.slane %v485, 1
    %v487 = vadd.f32 %v485, %v486
    %v488 = vrot.slane %v460, 4
    %v489 = vadd.f32 %v460, %v488
    %v490 = vrot.slane %v489, 2
    %v491 = vadd.f32 %v489, %v490
    %v492 = vrot.slane %v491, 1
    %v493 = vadd.f32 %v491, %v492
    %v494 = vrot.slane %v461, 4
    %v495 = vadd.f32 %v461, %v494
    %v496 = vrot.slane %v495, 2
    %v497 = vadd.f32 %v495, %v496
    %v498 = vrot.slane %v497, 1
    %v499 = vadd.f32 %v497, %v498
    %v500 = vrot.slane %v462, 4
    %v501 = vadd.f32 %v462, %v500
    %v502 = vrot.slane %v501, 2
    %v503 = vadd.f32 %v501, %v502
    %v504 = vrot.slane %v503, 1
    %v505 = vadd.f32 %v503, %v504
    %v506 = vrot.slane %v463, 4
    %v507 = vadd.f32 %v463, %v506
    %v508 = vrot.slane %v507, 2
    %v509 = vadd.f32 %v507, %v508
    %v510 = vrot.slane %v509, 1
    %v511 = vadd.f32 %v509, %v510
    %v513 = vrot.slane %v27, 1
    %v514 = vrot.slane %v27, 2
    %v515 = vrot.slane %v27, 3
    %v516 = vrot.slane %v27, 4
    %v517 = vrot.slane %v27, 5
    %v518 = vrot.slane %v27, 6
    %v519 = vrot.slane %v27, 7
    %v528 = vmul.f32 %v469, %v27
    %v529 = vmul.f32 %v475, %v513
    %v530 = vmul.f32 %v481, %v514
    %v531 = vmul.f32 %v487, %v515
    %v532 = vmul.f32 %v493, %v516
    %v533 = vmul.f32 %v499, %v517
    %v534 = vmul.f32 %v505, %v518
    %v535 = vmul.f32 %v511, %v519
    %v544 = vrot.slane %v529, 7
    %vm545 = vcmask 1041409
    %v546 = vsel %vm545, %v544, %v528
    %v547 = vrot.slane %v530, 6
    %vm548 = vcmask 1042434
    %v549 = vsel %vm548, %v547, %v546
    %v550 = vrot.slane %v531, 5
    %vm551 = vcmask 1043459
    %v552 = vsel %vm551, %v550, %v549
    %v553 = vrot.slane %v532, 4
    %vm554 = vcmask 1044484
    %v555 = vsel %vm554, %v553, %v552
    %v556 = vrot.slane %v533, 3
    %vm557 = vcmask 1045509
    %v558 = vsel %vm557, %v556, %v555
    %v559 = vrot.slane %v534, 2
    %vm560 = vcmask 1046534
    %v561 = vsel %vm560, %v559, %v558
    %v562 = vrot.slane %v535, 1
    %vm563 = vcmask 1047559
    %v564 = vsel %vm563, %v562, %v561
    %566 = vst [vmem:[#allocation2] sm:$0xff] %v564
    // Predicated region
    $region18: #{tpu_custom_call.1} parent=1 // pred_check
      _
    $region19: #{tpu_custom_call.1} parent=1 // pred_check_branch
      %568 = sbr.rel (0) target = $region21
    $region20: #{tpu_custom_call.1} parent=1 // pred_region
      %s570 = ssub.s32 128, 128
      %571 = vsyncadd [#allocation3], %s570
      %s573 = sshll.u32 [#allocation2], 4
      %s574 = int_to_ptr.vmem [resolvable:$true] %s573
      %576 = dma.vmem_to_hbm [thread:$0]  %s574, 128, %s4, [#allocation3]
    $region21: #{tpu_custom_call.1} parent=1 // pred_fallthru
      _
    // Predicated region
    $region22: #{tpu_custom_call.1} parent=1 // pred_check
      _
    $region23: #{tpu_custom_call.1} parent=1 // pred_check_branch
      %578 = sbr.rel (0) target = $region25
    $region24: #{tpu_custom_call.1} parent=1 // pred_region
      %579 = dma.done [#allocation3], 128
    $region25: #{tpu_custom_call.1} parent=1 // pred_fallthru
      _
    %580 = vsyncpa [#allocation3], 1

</llo_original>
